<compile_context>
chip_gen: v7x
topology: tpu7x:2x2x1
jax: 0.10.0
libtpu: 0.0.40
codegen_flags: <defaults>
</compile_context>

<pallas_src>
from functools import partial

import numpy as np
import jax
import jax.numpy as jnp
from jax.experimental import pallas as pl
from jax.experimental.pallas import tpu as pltpu

OBS_DIM = 4
HIDDEN = 64
NUM_ACTIONS = 2
FUSED = 2 * HIDDEN       # 128: fused policy|value lane width (native MXU width)
OUT_WIDTH = 8            # output slab: value | logit_diff (l1-l0) | 6 zero lanes


def _acp_kernel(x_ref, w1_ref, w2_ref, wh_ref, bias_ref, out_ref):
    cdt = w1_ref.dtype                       # MXU-operand dtype: bf16 (fast) or f32 (exact)
    x = x_ref[...].astype(cdt)               # (TB, 4) obs
    b1 = bias_ref[0:1, :]                    # (1, 128) [b1p | b1v], f32
    b2 = bias_ref[1:2, :]                    # (1, 128) [b2p | b2v], f32
    bh = bias_ref[2:3, 0:OUT_WIDTH]          # (1, 8)   lane0=bv, lane1=ba1-ba0, f32

    # Fused trunks: one 128-wide matmul per layer -> [hp | hv] then [latent_pi | latent_vf].
    # bf16 operands hit native MXU rate; accumulation is f32; tanh runs in the operand
    # dtype so its output feeds the next bf16 matmul directly (f32 in exact mode).
    h1 = jnp.tanh(
        (jnp.dot(x, w1_ref[...], preferred_element_type=jnp.float32) + b1).astype(cdt))
    latent = jnp.tanh(
        (jnp.dot(h1, w2_ref[...], preferred_element_type=jnp.float32) + b2).astype(cdt))

    # Fused 8-wide heads: col 0 = value (from latent_vf half), col 1 = l1 - l0 (from
    # latent_pi half), cols 2:8 = 0.  Stored directly as the 8-lane output slab; all
    # width-1 softmax / entropy / argmax / gather math happens lane-dense in the wrapper.
    heads = jnp.dot(latent, wh_ref[...], preferred_element_type=jnp.float32) + bh
    out_ref[...] = heads


def pack_params(p, mxu_dtype=jnp.bfloat16):
    """Pack the 14 per-layer parameters into 4 fused, lane-aligned buffers (done once).

    mxu_dtype=jnp.bfloat16 -> native-rate MXU fast path (default).
    mxu_dtype=jnp.float32  -> exact path for strict parity testing.
    Biases stay f32 (added to the f32 accumulator).
    """
    f32 = jnp.float32

    w1 = jnp.zeros((OBS_DIM, FUSED), f32)
    w1 = w1.at[:, 0:HIDDEN].set(p["w1p"])
    w1 = w1.at[:, HIDDEN:FUSED].set(p["w1v"])

    w2 = jnp.zeros((FUSED, FUSED), f32)                  # block-diagonal [[w2p,0],[0,w2v]]
    w2 = w2.at[0:HIDDEN, 0:HIDDEN].set(p["w2p"])
    w2 = w2.at[HIDDEN:FUSED, HIDDEN:FUSED].set(p["w2v"])

    wh = jnp.zeros((FUSED, OUT_WIDTH), f32)              # fused 8-wide heads
    wh = wh.at[HIDDEN:FUSED, 0:1].set(p["wv"])                        # value head
    wh = wh.at[0:HIDDEN, 1:2].set(p["wa"][:, 1:2] - p["wa"][:, 0:1])  # logit-diff head

    bias = jnp.zeros((8, FUSED), f32)
    bias = bias.at[0, 0:HIDDEN].set(p["b1p"][0])
    bias = bias.at[0, HIDDEN:FUSED].set(p["b1v"][0])
    bias = bias.at[1, 0:HIDDEN].set(p["b2p"][0])
    bias = bias.at[1, HIDDEN:FUSED].set(p["b2v"][0])
    bias = bias.at[2, 0].set(p["bv"][0, 0])
    bias = bias.at[2, 1].set(p["ba"][0, 1] - p["ba"][0, 0])

    return dict(w1=w1.astype(mxu_dtype), w2=w2.astype(mxu_dtype),
                wh=wh.astype(mxu_dtype), bias=bias)


def _cdiv(a, b):
    return (a + b - 1) // b


def _round_up(x, m):
    return ((x + m - 1) // m) * m


def _choose_tile(batch, block_rows):
    """Batch tile: large enough to amortize the ~0.35us/step grid overhead, but capped at
    ~ceil(B/2) (8-aligned) so the 'parallel' batch axis always has >=2 steps for v7x's
    2 TensorCores.  VMEM at tb=4096 is only a few MB -- far under every generation's
    scoped default (even v5e's 16 MiB), so memory does not constrain the tile."""
    block_rows = max(8, (block_rows // 8) * 8)
    if batch <= 8:
        return 8
    half = _round_up(_cdiv(batch, 2), 8)
    return min(block_rows, half)


def run_policy_kernel(obs, packed, block_rows=4096):
    """Run the fused forward kernel; returns the (B, OUT_WIDTH) f32 slab:
    col 0 = value, col 1 = logit diff (l1 - l0), cols 2:8 = 0."""
    B = obs.shape[0]
    tb = _choose_tile(B, block_rows)
    grid = (_cdiv(B, tb),)
    return pl.pallas_call(
        _acp_kernel,
        out_shape=jax.ShapeDtypeStruct((B, OUT_WIDTH), jnp.float32),
        grid=grid,
        in_specs=[
            pl.BlockSpec((tb, OBS_DIM), lambda i: (i, 0)),      # streamed obs blocks
            pl.BlockSpec((OBS_DIM, FUSED), lambda i: (0, 0)),   # resident fused weights
            pl.BlockSpec((FUSED, FUSED), lambda i: (0, 0)),
            pl.BlockSpec((FUSED, OUT_WIDTH), lambda i: (0, 0)),
            pl.BlockSpec((8, FUSED), lambda i: (0, 0)),         # resident bias slab (f32)
        ],
        out_specs=pl.BlockSpec((tb, OUT_WIDTH), lambda i: (i, 0)),
        compiler_params=pltpu.CompilerParams(
            dimension_semantics=("parallel",),   # shard batch blocks across v7x's 2 TCs
        ),
    )(obs, packed["w1"], packed["w2"], packed["wh"], packed["bias"])


def _softplus(t):
    return jnp.maximum(t, 0.0) + jnp.log1p(jnp.exp(-jnp.abs(t)))


@partial(jax.jit, static_argnames=("deterministic", "block_rows"))
def actor_critic_forward(obs, packed, actions=None, deterministic=False, rng=None,
                         block_rows=4096):
    """Mirror of ActorCriticPolicy.forward.

    actions is None  -> (actions, values, log_prob)
    actions provided -> (values, log_prob, entropy)

    The heavy math (trunks + heads) runs in the Pallas kernel; the 2-way categorical
    epilogue is lane-dense elementwise math over (B,) that XLA fuses into one op.
    """
    slab = run_policy_kernel(obs, packed, block_rows=block_rows)
    values = slab[:, 0:1]                     # (B, 1)
    diff = slab[:, 1]                         # (B,)  l1 - l0
    # 2-way log-softmax via stable softplus: logp1 = -softplus(-d), logp0 = -softplus(d)
    logp1 = -_softplus(-diff)
    logp0 = -_softplus(diff)

    if actions is None:
        if deterministic:
            take1 = diff > 0.0                # argmax; tie -> 0 (torch first-index)
        else:
            # TODO(synk): torch Categorical.sample() RNG stream has no JAX equivalent;
            # an equivalent Bernoulli(p1) draw is done with jax.random instead.
            if rng is None:
                rng = jax.random.PRNGKey(0)
            u = jax.random.uniform(rng, diff.shape, jnp.float32)
            take1 = u < jnp.exp(logp1)
        acts = take1.astype(jnp.int32)
        log_prob = jnp.where(take1, logp1, logp0)
        return acts, values, log_prob
    else:
        acts = jnp.asarray(actions, jnp.int32).reshape(diff.shape)
        log_prob = jnp.where(acts == 1, logp1, logp0)
        p0 = jnp.exp(logp0)
        p1 = jnp.exp(logp1)
        entropy = -(p0 * logp0 + p1 * logp1)
        return values, log_prob, entropy


def init_params(key):
    """Deterministic orthogonal init matching the module's gains; biases = 0."""
    ks = jax.random.split(key, 6)
    g_mlp = float(np.sqrt(2.0))
    ortho = jax.nn.initializers.orthogonal
    return dict(
        # policy trunk
        w1p=ortho(scale=g_mlp)(ks[0], (OBS_DIM, HIDDEN), jnp.float32),
        b1p=jnp.zeros((1, HIDDEN), jnp.float32),
        w2p=ortho(scale=g_mlp)(ks[1], (HIDDEN, HIDDEN), jnp.float32),
        b2p=jnp.zeros((1, HIDDEN), jnp.float32),
        # value trunk
        w1v=ortho(scale=g_mlp)(ks[2], (OBS_DIM, HIDDEN), jnp.float32),
        b1v=jnp.zeros((1, HIDDEN), jnp.float32),
        w2v=ortho(scale=g_mlp)(ks[3], (HIDDEN, HIDDEN), jnp.float32),
        b2v=jnp.zeros((1, HIDDEN), jnp.float32),
        # value head (gain 1)
        wv=ortho(scale=1.0)(ks[4], (HIDDEN, 1), jnp.float32),
        bv=jnp.zeros((1, 1), jnp.float32),
        # action head (gain 0.01)
        wa=ortho(scale=0.01)(ks[5], (HIDDEN, NUM_ACTIONS), jnp.float32),
        ba=jnp.zeros((1, NUM_ACTIONS), jnp.float32),
    )


def _reference_forward(obs, params, actions):
    """Pure-jnp f32 reference for correctness checking."""
    hp = jnp.tanh(obs @ params["w1p"] + params["b1p"])
    latent_pi = jnp.tanh(hp @ params["w2p"] + params["b2p"])
    hv = jnp.tanh(obs @ params["w1v"] + params["b1v"])
    latent_vf = jnp.tanh(hv @ params["w2v"] + params["b2v"])
    values = latent_vf @ params["wv"] + params["bv"]
    logits = latent_pi @ params["wa"] + params["ba"]
    logp = jax.nn.log_softmax(logits, axis=-1)
    probs = jnp.exp(logp)
    entropy = -jnp.sum(probs * logp, axis=-1)
    mode = jnp.argmax(logits, axis=-1).astype(jnp.int32)
    logp_mode = jnp.take_along_axis(logp, mode[:, None], axis=-1)[:, 0]
    logp_given = jnp.take_along_axis(logp, actions[:, None], axis=-1)[:, 0]
    return values, mode, logp_mode, logp_given, entropy, logp


if __name__ == "__main__":
    B = 30   # not a multiple of the tile -> exercises partial tail block + 2-step grid

    key = jax.random.PRNGKey(0)
    k_obs, k_act, k_sample = jax.random.split(key, 3)
    obs = jax.random.normal(k_obs, (B, OBS_DIM), jnp.float32)
    given_actions = jax.random.randint(k_act, (B,), 0, NUM_ACTIONS, jnp.int32)

    params = init_params(jax.random.PRNGKey(42))
    packed_bf16 = pack_params(params, mxu_dtype=jnp.bfloat16)   # fast path (native MXU)
    packed_f32 = pack_params(params, mxu_dtype=jnp.float32)     # exact path (parity test)

    # --- fast (bf16) path: all three forward branches ---
    actions_out, values1, log_prob1 = actor_critic_forward(
        obs, packed_bf16, actions=None, deterministic=True)
    sampled, values1b, log_prob1b = actor_critic_forward(
        obs, packed_bf16, actions=None, deterministic=False, rng=k_sample)
    values2, log_prob2, entropy2 = actor_critic_forward(
        obs, packed_bf16, actions=given_actions)

    # --- exact (f32) path: strict numerical parity with the reference ---
    e_actions, e_values, e_logp_mode = actor_critic_forward(
        obs, packed_f32, actions=None, deterministic=True)
    e_values2, e_logp_given, e_ent = actor_critic_forward(
        obs, packed_f32, actions=given_actions)

    jax.block_until_ready((actions_out, values1, log_prob1,
                           sampled, values1b, log_prob1b,
                           values2, log_prob2, entropy2,
                           e_actions, e_values, e_logp_mode,
                           e_values2, e_logp_given, e_ent))

    r_values, r_mode, r_logp_mode, r_logp_given, r_ent, r_logp = _reference_forward(
        obs, params, given_actions)

    # Exact-path checks (f32 MXU operands) -> strict tolerances.
    np.testing.assert_allclose(np.asarray(e_values), np.asarray(r_values), rtol=1e-5, atol=1e-5)
    np.testing.assert_allclose(np.asarray(e_values2), np.asarray(r_values), rtol=1e-5, atol=1e-5)
    np.testing.assert_array_equal(np.asarray(e_actions), np.asarray(r_mode))
    np.testing.assert_allclose(np.asarray(e_logp_mode), np.asarray(r_logp_mode), rtol=1e-5, atol=1e-5)
    np.testing.assert_allclose(np.asarray(e_logp_given), np.asarray(r_logp_given), rtol=1e-5, atol=1e-5)
    np.testing.assert_allclose(np.asarray(e_ent), np.asarray(r_ent), rtol=1e-5, atol=1e-5)

    # Fast-path checks (bf16 MXU operands) -> relaxed tolerances; argmax is validated as
    # "reference log-prob of whatever action the kernel chose" (robust to near-tie flips).
    np.testing.assert_allclose(np.asarray(values1), np.asarray(r_values), rtol=5e-2, atol=2e-2)
    np.testing.assert_allclose(np.asarray(values2), np.asarray(r_values), rtol=5e-2, atol=2e-2)
    np.testing.assert_allclose(np.asarray(entropy2), np.asarray(r_ent), rtol=1e-2, atol=5e-3)
    a = np.asarray(actions_out)
    assert set(np.unique(a)).issubset({0, 1})
    r_logp_at_a = np.take_along_axis(np.asarray(r_logp), a[:, None], axis=-1)[:, 0]
    np.testing.assert_allclose(np.asarray(log_prob1), r_logp_at_a, rtol=1e-2, atol=5e-3)
    np.testing.assert_allclose(np.asarray(log_prob2), np.asarray(r_logp_given), rtol=1e-2, atol=5e-3)
    s = np.asarray(sampled)
    assert set(np.unique(s)).issubset({0, 1})
    r_logp_at_s = np.take_along_axis(np.asarray(r_logp), s[:, None], axis=-1)[:, 0]
    np.testing.assert_allclose(np.asarray(log_prob1b), r_logp_at_s, rtol=1e-2, atol=5e-3)
    np.testing.assert_allclose(np.asarray(values1b), np.asarray(r_values), rtol=5e-2, atol=2e-2)

    print("KERNEL_OK")
</pallas_src>

<mosaic_0001>
module attributes {stable_mosaic.version = 11 : i64} {
  func.func @_acp_kernel(%arg0: i32, %arg1: memref<16x4xf32, #tpu.memory_space<vmem>>, %arg2: memref<4x128xbf16, #tpu.memory_space<vmem>>, %arg3: memref<128x128xbf16, #tpu.memory_space<vmem>>, %arg4: memref<128x8xbf16, #tpu.memory_space<vmem>>, %arg5: memref<8x128xf32, #tpu.memory_space<vmem>>, %arg6: memref<16x8xf32, #tpu.memory_space<vmem>>) attributes {dimension_semantics = [#tpu.dimension_semantics<parallel>], iteration_bounds = array<i64: 2>, scalar_prefetch = 0 : i64, scratch_operands = 0 : i64, tpu.core_type = #tpu.core_type<tc>, window_params = [{transform_indices = @transform_0, window_bounds = array<i64: 16, 4>}, {pipeline_mode = #tpu.pipeline_mode<synchronous>, transform_indices = @transform_1, window_bounds = array<i64: 4, 128>}, {pipeline_mode = #tpu.pipeline_mode<synchronous>, transform_indices = @transform_2, window_bounds = array<i64: 128, 128>}, {pipeline_mode = #tpu.pipeline_mode<synchronous>, transform_indices = @transform_3, window_bounds = array<i64: 128, 8>}, {pipeline_mode = #tpu.pipeline_mode<synchronous>, transform_indices = @transform_4, window_bounds = array<i64: 8, 128>}, {transform_indices = @transform_5, window_bounds = array<i64: 16, 8>}]} {
    %c0 = arith.constant 0 : index
    %c0_0 = arith.constant 0 : index
    %0 = vector.load %arg1[%c0, %c0_0] : memref<16x4xf32, #tpu.memory_space<vmem>>, vector<16x4xf32>
    %1 = arith.truncf %0 : vector<16x4xf32> to vector<16x4xbf16>
    %c0_1 = arith.constant 0 : index
    %c0_2 = arith.constant 0 : index
    %2 = vector.load %arg5[%c0_1, %c0_2] : memref<8x128xf32, #tpu.memory_space<vmem>>, vector<1x128xf32>
    %c1 = arith.constant 1 : index
    %c0_3 = arith.constant 0 : index
    %3 = vector.load %arg5[%c1, %c0_3] : memref<8x128xf32, #tpu.memory_space<vmem>>, vector<1x128xf32>
    %c2 = arith.constant 2 : index
    %c0_4 = arith.constant 0 : index
    %4 = vector.load %arg5[%c2, %c0_4] : memref<8x128xf32, #tpu.memory_space<vmem>>, vector<1x8xf32>
    %c0_5 = arith.constant 0 : index
    %c0_6 = arith.constant 0 : index
    %5 = vector.load %arg2[%c0_5, %c0_6] : memref<4x128xbf16, #tpu.memory_space<vmem>>, vector<4x128xbf16>
    %cst = arith.constant dense<0.000000e+00> : vector<16x128xf32>
    %6 = tpu.matmul %1, %5, %cst {dimension_numbers = #tpu.dot_dimension_numbers<[1], [0], [0], [1], [0, 0, 1, 1], [], []>} : vector<16x4xbf16>, vector<4x128xbf16>, vector<16x128xf32> -> vector<16x128xf32>
    %7 = vector.broadcast %2 : vector<1x128xf32> to vector<16x128xf32>
    %8 = arith.addf %6, %7 : vector<16x128xf32>
    %9 = arith.truncf %8 : vector<16x128xf32> to vector<16x128xbf16>
    %10 = math.tanh %9 : vector<16x128xbf16>
    %c0_7 = arith.constant 0 : index
    %c0_8 = arith.constant 0 : index
    %11 = vector.load %arg3[%c0_7, %c0_8] : memref<128x128xbf16, #tpu.memory_space<vmem>>, vector<128x128xbf16>
    %cst_9 = arith.constant dense<0.000000e+00> : vector<16x128xf32>
    %12 = tpu.matmul %10, %11, %cst_9 {dimension_numbers = #tpu.dot_dimension_numbers<[1], [0], [0], [1], [0, 0, 1, 1], [], []>} : vector<16x128xbf16>, vector<128x128xbf16>, vector<16x128xf32> -> vector<16x128xf32>
    %13 = vector.broadcast %3 : vector<1x128xf32> to vector<16x128xf32>
    %14 = arith.addf %12, %13 : vector<16x128xf32>
    %15 = arith.truncf %14 : vector<16x128xf32> to vector<16x128xbf16>
    %16 = math.tanh %15 : vector<16x128xbf16>
    %c0_10 = arith.constant 0 : index
    %c0_11 = arith.constant 0 : index
    %17 = vector.load %arg4[%c0_10, %c0_11] : memref<128x8xbf16, #tpu.memory_space<vmem>>, vector<128x8xbf16>
    %cst_12 = arith.constant dense<0.000000e+00> : vector<16x8xf32>
    %18 = tpu.matmul %16, %17, %cst_12 {dimension_numbers = #tpu.dot_dimension_numbers<[1], [0], [0], [1], [0, 0, 1, 1], [], []>} : vector<16x128xbf16>, vector<128x8xbf16>, vector<16x8xf32> -> vector<16x8xf32>
    %19 = vector.broadcast %4 : vector<1x8xf32> to vector<16x8xf32>
    %20 = arith.addf %18, %19 : vector<16x8xf32>
    %c0_13 = arith.constant 0 : index
    %c0_14 = arith.constant 0 : index
    %21 = vector.load %arg6[%c0_13, %c0_14] : memref<16x8xf32, #tpu.memory_space<vmem>>, vector<16x8xf32>
    tpu.vector_store %arg6[%c0_13, %c0_14], %20 {strides = array<i32>} : memref<16x8xf32, #tpu.memory_space<vmem>>, vector<16x8xf32>,
    return
  }
  func.func @transform_0(%arg0: i32) -> (i32, i32) {
    %c0_i32 = arith.constant 0 : i32
    %c0_i32_0 = arith.constant 0 : i32
    return %arg0, %c0_i32 : i32, i32
  }
  func.func @transform_1(%arg0: i32) -> (i32, i32) {
    %c0_i32 = arith.constant 0 : i32
    %c0_i32_0 = arith.constant 0 : i32
    %c0_i32_1 = arith.constant 0 : i32
    return %c0_i32, %c0_i32_0 : i32, i32
  }
  func.func @transform_2(%arg0: i32) -> (i32, i32) {
    %c0_i32 = arith.constant 0 : i32
    %c0_i32_0 = arith.constant 0 : i32
    %c0_i32_1 = arith.constant 0 : i32
    return %c0_i32, %c0_i32_0 : i32, i32
  }
  func.func @transform_3(%arg0: i32) -> (i32, i32) {
    %c0_i32 = arith.constant 0 : i32
    %c0_i32_0 = arith.constant 0 : i32
    %c0_i32_1 = arith.constant 0 : i32
    return %c0_i32, %c0_i32_0 : i32, i32
  }
  func.func @transform_4(%arg0: i32) -> (i32, i32) {
    %c0_i32 = arith.constant 0 : i32
    %c0_i32_0 = arith.constant 0 : i32
    %c0_i32_1 = arith.constant 0 : i32
    return %c0_i32, %c0_i32_0 : i32, i32
  }
  func.func @transform_5(%arg0: i32) -> (i32, i32) {
    %c0_i32 = arith.constant 0 : i32
    %c0_i32_0 = arith.constant 0 : i32
    return %arg0, %c0_i32 : i32, i32
  }
}

</mosaic_0001>

<llo_original>
// kernel: actor_critic_forward.1
$region0: #{actor_critic_forward.1}
  #allocation0 [shape = 'u32[]', space=smem, size = 0x4, offset = 0x4, fixed_abs, tag = 'smem constant byte address 0x4 - core index']
  #allocation1 [shape = 'u32[144,128]{1,0:T(1,128)}', space=vmem, size = 0x12000, scoped, tag = 'internal scratch']
  %s0 = inlined_call_operand.vmem [shape: f32[30,4], index: 0, kind: input, shape index: {}]
  %s1 = inlined_call_operand.vmem [shape: bf16[4,128], index: 1, kind: input, shape index: {}]
  %s2 = inlined_call_operand.vmem [shape: bf16[128,128], index: 2, kind: input, shape index: {}]
  %s3 = inlined_call_operand.vmem [shape: bf16[128,8], index: 3, kind: input, shape index: {}]
  %s4 = inlined_call_operand.vmem [shape: f32[8,128], index: 4, kind: input, shape index: {}]
  %s5 = inlined_call_operand.vmem [shape: f32[30,8], index: 5, kind: output, shape index: {}]
  %s6 = sld [smem:[#allocation0]]
  $region53: #{actor_critic_forward.1} parent=0
    _
  %s8 = ssub.s32 1, %s6
  %s9 = scalar_select 0, %s8, %s6
  loop: start=0, step=1, limit=4
  $region2: #{actor_critic_forward.1} parent=0 // loop_pre_header
    _
  $region3: #{actor_critic_forward.1} parent=0 // loop_header
    %s11 = sphi 0, %s15
    %p12 = scmp.ge.s32.totalorder %s11, 4
    %s21 = sphi 0, %s23
    %s24 = sphi 0, %s21
    %s25 = sphi 0, %s24
    %s41 = sphi 0, %s25
    %s45 = sphi 0, %s45
    %s47 = sphi 0, %s45
    %s48 = sphi 0, %s47
    %s62 = sphi 0, %s48
    %s66 = sphi 0, %s66
    %s68 = sphi 0, %s66
    %s69 = sphi 0, %s68
    %s83 = sphi 0, %s69
    %s87 = sphi 0, %s87
    %s89 = sphi 0, %s87
    %s90 = sphi 0, %s89
    %s104 = sphi 0, %s90
    %s108 = sphi 0, %s108
    %s110 = sphi 0, %s108
    %s111 = sphi 0, %s110
    %s125 = sphi 0, %s111
    %s131 = sphi 0, %s133
    %s134 = sphi 0, %s131
    %s135 = sphi 0, %s134
    %s151 = sphi 0, %s135
  $region4: #{actor_critic_forward.1} parent=0 // loop_header_branch
    %14 = sbr.rel (%p12) target = $region8
  $region5: #{actor_critic_forward.1} parent=0 // loop_body
    %s16 = ssub.s32 %s11, 1
    %s17 = ssub.s32 %s11, 2
    %s18 = sadd.s32 %s11, 1
    %s19 = ssub.s32 %s11, %s18
    %p20 = scmp.eq.s32.totalorder %s19, 0
    %s22 = sadd.s32 %s21, 1
    %s23 = scalar_select %p20, %s21, %s22
    %p26 = pneg %p20
    %p27 = scmp.eq.s32.totalorder %s11, 1
    %p28 = por %p26, %p27
    %p29 = scmp.ne.s32.totalorder %s21, %s24
    %p30 = scmp.eq.s32.totalorder %s11, 0
    %p31 = por %p29, %p30
    %p32 = scmp.ne.s32.totalorder %s21, %s24
    %p33 = scmp.eq.s32.totalorder %s16, 1
    %p34 = por %p32, %p33
    %p35 = scmp.ne.s32.totalorder %s24, %s25
    %p36 = scmp.eq.s32.totalorder %s16, 0
    %p37 = por %p35, %p36
    %p38 = scmp.ne.s32.totalorder %s24, %s25
    %p39 = scmp.eq.s32.totalorder %s17, 1
    %p40 = por %p38, %p39
    %p42 = scmp.ne.s32.totalorder %s25, %s41
    %p43 = scmp.eq.s32.totalorder %s17, 0
    %p44 = por %p42, %p43
    %s46 = sadd.s32 %s45, 1
    %p49 = scmp.eq.s32.totalorder %s11, 1
    %p50 = scmp.ne.s32.totalorder %s45, %s47
    %p51 = scmp.eq.s32.totalorder %s11, 0
    %p52 = por %p50, %p51
    %p53 = scmp.ne.s32.totalorder %s45, %s47
    %p54 = scmp.eq.s32.totalorder %s16, 1
    %p55 = por %p53, %p54
    %p56 = scmp.ne.s32.totalorder %s47, %s48
    %p57 = scmp.eq.s32.totalorder %s16, 0
    %p58 = por %p56, %p57
    %p59 = scmp.ne.s32.totalorder %s47, %s48
    %p60 = scmp.eq.s32.totalorder %s17, 1
    %p61 = por %p59, %p60
    %p63 = scmp.ne.s32.totalorder %s48, %s62
    %p64 = scmp.eq.s32.totalorder %s17, 0
    %p65 = por %p63, %p64
    %s67 = sadd.s32 %s66, 1
    %p70 = scmp.eq.s32.totalorder %s11, 1
    %p71 = scmp.ne.s32.totalorder %s66, %s68
    %p72 = scmp.eq.s32.totalorder %s11, 0
    %p73 = por %p71, %p72
    %p74 = scmp.ne.s32.totalorder %s66, %s68
    %p75 = scmp.eq.s32.totalorder %s16, 1
    %p76 = por %p74, %p75
    %p77 = scmp.ne.s32.totalorder %s68, %s69
    %p78 = scmp.eq.s32.totalorder %s16, 0
    %p79 = por %p77, %p78
    %p80 = scmp.ne.s32.totalorder %s68, %s69
    %p81 = scmp.eq.s32.totalorder %s17, 1
    %p82 = por %p80, %p81
    %p84 = scmp.ne.s32.totalorder %s69, %s83
    %p85 = scmp.eq.s32.totalorder %s17, 0
    %p86 = por %p84, %p85
    %s88 = sadd.s32 %s87, 1
    %p91 = scmp.eq.s32.totalorder %s11, 1
    %p92 = scmp.ne.s32.totalorder %s87, %s89
    %p93 = scmp.eq.s32.totalorder %s11, 0
    %p94 = por %p92, %p93
    %p95 = scmp.ne.s32.totalorder %s87, %s89
    %p96 = scmp.eq.s32.totalorder %s16, 1
    %p97 = por %p95, %p96
    %p98 = scmp.ne.s32.totalorder %s89, %s90
    %p99 = scmp.eq.s32.totalorder %s16, 0
    %p100 = por %p98, %p99
    %p101 = scmp.ne.s32.totalorder %s89, %s90
    %p102 = scmp.eq.s32.totalorder %s17, 1
    %p103 = por %p101, %p102
    %p105 = scmp.ne.s32.totalorder %s90, %s104
    %p106 = scmp.eq.s32.totalorder %s17, 0
    %p107 = por %p105, %p106
    %s109 = sadd.s32 %s108, 1
    %p112 = scmp.eq.s32.totalorder %s11, 1
    %p113 = scmp.ne.s32.totalorder %s108, %s110
    %p114 = scmp.eq.s32.totalorder %s11, 0
    %p115 = por %p113, %p114
    %p116 = scmp.ne.s32.totalorder %s108, %s110
    %p117 = scmp.eq.s32.totalorder %s16, 1
    %p118 = por %p116, %p117
    %p119 = scmp.ne.s32.totalorder %s110, %s111
    %p120 = scmp.eq.s32.totalorder %s16, 0
    %p121 = por %p119, %p120
    %p122 = scmp.ne.s32.totalorder %s110, %s111
    %p123 = scmp.eq.s32.totalorder %s17, 1
    %p124 = por %p122, %p123
    %p126 = scmp.ne.s32.totalorder %s111, %s125
    %p127 = scmp.eq.s32.totalorder %s17, 0
    %p128 = por %p126, %p127
    %s129 = ssub.s32 %s11, %s18
    %p130 = scmp.eq.s32.totalorder %s129, 0
    %s132 = sadd.s32 %s131, 1
    %s133 = scalar_select %p130, %s131, %s132
    %p136 = pneg %p130
    %p137 = scmp.eq.s32.totalorder %s11, 1
    %p138 = por %p136, %p137
    %p139 = scmp.ne.s32.totalorder %s131, %s134
    %p140 = scmp.eq.s32.totalorder %s11, 0
    %p141 = por %p139, %p140
    %p142 = scmp.ne.s32.totalorder %s131, %s134
    %p143 = scmp.eq.s32.totalorder %s16, 1
    %p144 = por %p142, %p143
    %p145 = scmp.ne.s32.totalorder %s134, %s135
    %p146 = scmp.eq.s32.totalorder %s16, 0
    %p147 = por %p145, %p146
    %p148 = scmp.ne.s32.totalorder %s134, %s135
    %p149 = scmp.eq.s32.totalorder %s17, 1
    %p150 = por %p148, %p149
    %p152 = scmp.ne.s32.totalorder %s135, %s151
    %p153 = scmp.eq.s32.totalorder %s17, 0
    %p154 = por %p152, %p153
    %p155 = scmp.le.s32.totalorder 1, %s11
    %p156 = scmp.lt.s32.totalorder %s11, 3
    %p157 = pnand %p155, %p156
    %p158 = pneg %p157
    // Predicated region
    $region9: #{actor_critic_forward.1} parent=5 // pred_check
      _
    $region10: #{actor_critic_forward.1} parent=5 // pred_check_branch
      %160 = sbr.rel (%p157) target = $region12
    $region11: #{actor_critic_forward.1} parent=5 // pred_region
      %s161 = ssub.s32 %s11, 1
      // Predicated region
      $region13: #{actor_critic_forward.1} parent=11 // pred_check
        %p162 = pneg %p58
      $region14: #{actor_critic_forward.1} parent=11 // pred_check_branch
        %164 = sbr.rel (%p162) target = $region16
      $region15: #{actor_critic_forward.1} parent=11 // pred_region
        _
      $region16: #{actor_critic_forward.1} parent=11 // pred_fallthru
        _
      // Predicated region
      $region17: #{actor_critic_forward.1} parent=11 // pred_check
        %p165 = pneg %p79
      $region18: #{actor_critic_forward.1} parent=11 // pred_check_branch
        %167 = sbr.rel (%p165) target = $region20
      $region19: #{actor_critic_forward.1} parent=11 // pred_region
        _
      $region20: #{actor_critic_forward.1} parent=11 // pred_fallthru
        _
      // Predicated region
      $region21: #{actor_critic_forward.1} parent=11 // pred_check
        %p168 = pneg %p100
      $region22: #{actor_critic_forward.1} parent=11 // pred_check_branch
        %170 = sbr.rel (%p168) target = $region24
      $region23: #{actor_critic_forward.1} parent=11 // pred_region
        _
      $region24: #{actor_critic_forward.1} parent=11 // pred_fallthru
        _
      // Predicated region
      $region25: #{actor_critic_forward.1} parent=11 // pred_check
        %p171 = pneg %p121
      $region26: #{actor_critic_forward.1} parent=11 // pred_check_branch
        %173 = sbr.rel (%p171) target = $region28
      $region27: #{actor_critic_forward.1} parent=11 // pred_region
        _
      $region28: #{actor_critic_forward.1} parent=11 // pred_fallthru
        _
    $region12: #{actor_critic_forward.1} parent=5 // pred_fallthru
      _
    %p174 = scmp.lt.s32.totalorder %s11, 2
    // Predicated region
    $region29: #{actor_critic_forward.1} parent=5 // pred_check
      %p175 = pneg %p174
    $region30: #{actor_critic_forward.1} parent=5 // pred_check_branch
      %177 = sbr.rel (%p175) target = $region32
    $region31: #{actor_critic_forward.1} parent=5 // pred_region
      // Predicated region
      $region33: #{actor_critic_forward.1} parent=31 // pred_check
        %p178 = pneg %p31
      $region34: #{actor_critic_forward.1} parent=31 // pred_check_branch
        %180 = sbr.rel (%p178) target = $region36
      $region35: #{actor_critic_forward.1} parent=31 // pred_region
        %s181 = smul.u32 2, %s11
        %p182 = scmp.lt.s32.totalorder %s181, 3
        %s183 = scalar_select %p182, %s181, 3
        %s184 = smul.addr %s183, 8
        %s185 = scalar_lea.vmem %s0, %s184
        %s186 = smul.u32 2, %s11
      $region36: #{actor_critic_forward.1} parent=31 // pred_fallthru
        _
    $region32: #{actor_critic_forward.1} parent=5 // pred_fallthru
      _
    %p187 = scmp.le.s32.totalorder 1, %s11
    %p188 = scmp.lt.s32.totalorder %s11, 3
    %p189 = pnand %p187, %p188
    %p190 = pneg %p189
    // Predicated region
    $region37: #{actor_critic_forward.1} parent=5 // pred_check
      _
    $region38: #{actor_critic_forward.1} parent=5 // pred_check_branch
      %192 = sbr.rel (%p189) target = $region40
    $region39: #{actor_critic_forward.1} parent=5 // pred_region
      %s193 = ssub.s32 %s11, 1
      %s194 = smul.u32 2, %s16
      %p195 = scmp.lt.s32.totalorder %s194, 3
      %s196 = scalar_select %p195, %s194, 3
      %s197 = smul.addr %s196, 8
      %s198 = scalar_lea.vmem %s0, %s197
      %p199 = pneg %p37
      %p200 = pneg %p34
      %p201 = pneg %p58
      %p202 = pneg %p55
      %p203 = pneg %p79
      %p204 = pneg %p76
      %p205 = pneg %p100
      %p206 = pneg %p97
      %p207 = pneg %p121
      %p208 = pneg %p118
      %p209 = pneg %p147
      %p210 = pneg %p144
      %s211 = smul.u32 2, %s16
      %p212 = scmp.lt.s32.totalorder %s211, 3
      %s213 = scalar_select %p212, %s211, 3
      %s214 = smul.addr %s213, 8
      %s215 = scalar_lea.vmem %s5, %s214
      %s216 = smul.u32 2, %s16
      %p217 = scmp.lt.s32.totalorder %s216, 3
      %s218 = scalar_select %p217, %s216, 3
      %s219 = smul.addr %s218, 8
      %s220 = scalar_lea.vmem %s0, %s219
      %s221 = smul.u32 2, %s16
      %s222 = smul.u32 2, %s16
      %p223 = scmp.lt.s32.totalorder %s222, 3
      %s224 = scalar_select %p223, %s222, 3
      %s225 = smul.addr %s224, 8
      %s226 = scalar_lea.vmem %s5, %s225
      %s227 = smul.u32 2, %s16
      %v229 = vld [vmem:[%s220] sm:$0xff]
      %v230 = vld [vmem:[%s220 + $0x8] sm:$0xff]
      %v231 = vpack.c.bf16 %v230, %v229
      %v232 = vld [vmem:[%s4] sm:$0x1]
      %v233 = vld [vmem:[%s4 + $0x1] sm:$0x1]
      %v234 = vld [vmem:[%s4 + $0x2] sm:$0x1]
      %v235 = vld [vmem:[%s1] sm:$0x3]
      %v236 = vlaneseq
      %v237 = vshrl.u32 %v236, 7
      %v238 = vsub.s32 0, %v237
      %v239 = vrot.slane %v232, %v238
      %vm240 = vcmask 31744
      %v242 = vsel %vm240, %v231, 0
      %vm244 = vcmask 1041408
      %v246 = vsel %vm244, %v235, 0
      %248 = vmatprep.subr.bf16.mxu0 0
      %249 = vmatpush1.bf16.msra.mxu0 %v246
      %250 = vmatprep.subr.bf16.mxu0 0
      %251 = vmatpush1.bf16.msra.mxu0 0
      %252 = vmatprep.subr.bf16.mxu0 0
      %253 = vmatpush1.bf16.msra.mxu0 0
      %254 = vmatprep.subr.bf16.mxu0 0
      %255 = vmatpush1.bf16.msra.mxu0 0
      %256 = vmatprep.subr.bf16.mxu0 0
      %257 = vmatpush1.bf16.msra.mxu0 0
      %258 = vmatprep.subr.bf16.mxu0 0
      %259 = vmatpush1.bf16.msra.mxu0 0
      %260 = vmatprep.subr.bf16.mxu0 0
      %261 = vmatpush1.bf16.msra.mxu0 0
      %262 = vmatprep.subr.bf16.mxu0 0
      %263 = vmatpush1.bf16.msra.mxu0 0
      %264 = vmatprep.subr.bf16.mxu0 0
      %265 = vmatpush1.bf16.msra.mxu0 0
      %266 = vmatprep.subr.bf16.mxu0 0
      %267 = vmatpush1.bf16.msra.mxu0 0
      %268 = vmatprep.subr.bf16.mxu0 0
      %269 = vmatpush1.bf16.msra.mxu0 0
      %270 = vmatprep.subr.bf16.mxu0 0
      %271 = vmatpush1.bf16.msra.mxu0 0
      %272 = vmatprep.subr.bf16.mxu0 0
      %273 = vmatpush1.bf16.msra.mxu0 0
      %274 = vmatprep.subr.bf16.mxu0 0
      %275 = vmatpush1.bf16.msra.mxu0 0
      %276 = vmatprep.subr.bf16.mxu0 0
      %277 = vmatpush1.bf16.msra.mxu0 0
      %278 = vmatprep.subr.bf16.mxu0 0
      %279 = vmatpush1.bf16.msra.mxu0 0
      %280 = vmatprep.mubr.bf16.mxu0 0
      %281 = vmatmul.mubr.bf16.gmra.mrb[0].mxu0 %v242
      %v282 = vpop.f32.mrb[0].mxu0
      %v283 = vadd.f32 %v239, %v282
      %v284 = vpop.f32.mrb[0].mxu0
      %v285 = vpop.f32.mrb[0].mxu0
      %v286 = vadd.f32 %v239, %v285
      %v287 = vpop.f32.mrb[0].mxu0
      %288 = vdwg.mxu0
      %v289 = vpack.c.bf16 %v286, %v283
      %v290 = vtanh.bf16.pop %v289
      %v291 = vld [vmem:[%s2] sm:$0xf]
      %v292 = vld [vmem:[%s2 + $0x4] sm:$0xf]
      %v293 = vld [vmem:[%s2 + $0x8] sm:$0xf]
      %v294 = vld [vmem:[%s2 + $0xc] sm:$0xf]
      %v295 = vld [vmem:[%s2 + $0x10] sm:$0xf]
      %v296 = vld [vmem:[%s2 + $0x14] sm:$0xf]
      %v297 = vld [vmem:[%s2 + $0x18] sm:$0xf]
      %v298 = vld [vmem:[%s2 + $0x1c] sm:$0xf]
      %v299 = vld [vmem:[%s2 + $0x20] sm:$0xf]
      %v300 = vld [vmem:[%s2 + $0x24] sm:$0xf]
      %v301 = vld [vmem:[%s2 + $0x28] sm:$0xf]
      %v302 = vld [vmem:[%s2 + $0x2c] sm:$0xf]
      %v303 = vld [vmem:[%s2 + $0x30] sm:$0xf]
      %v304 = vld [vmem:[%s2 + $0x34] sm:$0xf]
      %v305 = vld [vmem:[%s2 + $0x38] sm:$0xf]
      %v306 = vld [vmem:[%s2 + $0x3c] sm:$0xf]
      %v307 = vlaneseq
      %v308 = vshrl.u32 %v307, 7
      %v309 = vsub.s32 0, %v308
      %v310 = vrot.slane %v233, %v309
      %v327 = vunpack.c.l.b16 %v291
      %v328 = vunpack.c.l.b16 %v292
      %v329 = vunpack.c.l.b16 %v293
      %v330 = vunpack.c.l.b16 %v294
      %v331 = vunpack.c.l.b16 %v295
      %v332 = vunpack.c.l.b16 %v296
      %v333 = vunpack.c.l.b16 %v297
      %v334 = vunpack.c.l.b16 %v298
      %v335 = vunpack.c.l.b16 %v299
      %v336 = vunpack.c.l.b16 %v300
      %v337 = vunpack.c.l.b16 %v301
      %v338 = vunpack.c.l.b16 %v302
      %v339 = vunpack.c.l.b16 %v303
      %v340 = vunpack.c.l.b16 %v304
      %v341 = vunpack.c.l.b16 %v305
      %v342 = vunpack.c.l.b16 %v306
      %v343 = vpack.c.b16 %v328, %v327
      %v344 = vpack.c.b16 %v330, %v329
      %v345 = vpack.c.b16 %v332, %v331
      %v346 = vpack.c.b16 %v334, %v333
      %v347 = vpack.c.b16 %v336, %v335
      %v348 = vpack.c.b16 %v338, %v337
      %v349 = vpack.c.b16 %v340, %v339
      %v350 = vpack.c.b16 %v342, %v341
      %359 = vmatprep.subr.bf16.mxu0 0
      %360 = vmatpush1.bf16.msra.mxu0 %v343
      %361 = vmatprep.subr.bf16.mxu0 0
      %362 = vmatpush1.bf16.msra.mxu0 %v344
      %363 = vmatprep.subr.bf16.mxu0 0
      %364 = vmatpush1.bf16.msra.mxu0 %v345
      %365 = vmatprep.subr.bf16.mxu0 0
      %366 = vmatpush1.bf16.msra.mxu0 %v346
      %367 = vmatprep.subr.bf16.mxu0 0
      %368 = vmatpush1.bf16.msra.mxu0 %v347
      %369 = vmatprep.subr.bf16.mxu0 0
      %370 = vmatpush1.bf16.msra.mxu0 %v348
      %371 = vmatprep.subr.bf16.mxu0 0
      %372 = vmatpush1.bf16.msra.mxu0 %v349
      %373 = vmatprep.subr.bf16.mxu0 0
      %374 = vmatpush1.bf16.msra.mxu0 %v350
      %375 = vmatprep.subr.bf16.mxu0 0
      %376 = vmatpush1.bf16.msra.mxu0 0
      %377 = vmatprep.subr.bf16.mxu0 0
      %378 = vmatpush1.bf16.msra.mxu0 0
      %379 = vmatprep.subr.bf16.mxu0 0
      %380 = vmatpush1.bf16.msra.mxu0 0
      %381 = vmatprep.subr.bf16.mxu0 0
      %382 = vmatpush1.bf16.msra.mxu0 0
      %383 = vmatprep.subr.bf16.mxu0 0
      %384 = vmatpush1.bf16.msra.mxu0 0
      %385 = vmatprep.subr.bf16.mxu0 0
      %386 = vmatpush1.bf16.msra.mxu0 0
      %387 = vmatprep.subr.bf16.mxu0 0
      %388 = vmatpush1.bf16.msra.mxu0 0
      %389 = vmatprep.subr.bf16.mxu0 0
      %390 = vmatpush1.bf16.msra.mxu0 0
      %391 = vmatprep.mubr.bf16.mxu0 0
      %392 = vmatmul.mubr.bf16.gmra.mrb[0].mxu0 %v290
      %v393 = vpop.f32.mrb[0].mxu0
      %v394 = vadd.f32 %v310, %v393
      %v395 = vpop.f32.mrb[0].mxu0
      %v396 = vpop.f32.mrb[0].mxu0
      %v397 = vadd.f32 %v310, %v396
      %v398 = vpop.f32.mrb[0].mxu0
      %399 = vdwg.mxu0
      %v400 = vpack.c.bf16 %v397, %v394
      %v401 = vtanh.bf16.pop %v400
      %v402 = vld [vmem:[%s3] sm:$0xf]
      %v403 = vld [vmem:[%s3 + $0x4] sm:$0xf]
      %v404 = vld [vmem:[%s3 + $0x8] sm:$0xf]
      %v405 = vld [vmem:[%s3 + $0xc] sm:$0xf]
      %v406 = vld [vmem:[%s3 + $0x10] sm:$0xf]
      %v407 = vld [vmem:[%s3 + $0x14] sm:$0xf]
      %v408 = vld [vmem:[%s3 + $0x18] sm:$0xf]
      %v409 = vld [vmem:[%s3 + $0x1c] sm:$0xf]
      %v410 = vld [vmem:[%s3 + $0x20] sm:$0xf]
      %v411 = vld [vmem:[%s3 + $0x24] sm:$0xf]
      %v412 = vld [vmem:[%s3 + $0x28] sm:$0xf]
      %v413 = vld [vmem:[%s3 + $0x2c] sm:$0xf]
      %v414 = vld [vmem:[%s3 + $0x30] sm:$0xf]
      %v415 = vld [vmem:[%s3 + $0x34] sm:$0xf]
      %v416 = vld [vmem:[%s3 + $0x38] sm:$0xf]
      %v417 = vld [vmem:[%s3 + $0x3c] sm:$0xf]
      %v418 = vlaneseq
      %v419 = vshrl.u32 %v418, 7
      %v420 = vsub.s32 0, %v419
      %v421 = vrot.slane %v234, %v420
      %v438 = vunpack.c.l.b16 %v402
      %v439 = vunpack.c.l.b16 %v403
      %v440 = vunpack.c.l.b16 %v404
      %v441 = vunpack.c.l.b16 %v405
      %v442 = vunpack.c.l.b16 %v406
      %v443 = vunpack.c.l.b16 %v407
      %v444 = vunpack.c.l.b16 %v408
      %v445 = vunpack.c.l.b16 %v409
      %v446 = vunpack.c.l.b16 %v410
      %v447 = vunpack.c.l.b16 %v411
      %v448 = vunpack.c.l.b16 %v412
      %v449 = vunpack.c.l.b16 %v413
      %v450 = vunpack.c.l.b16 %v414
      %v451 = vunpack.c.l.b16 %v415
      %v452 = vunpack.c.l.b16 %v416
      %v453 = vunpack.c.l.b16 %v417
      %v454 = vpack.c.b16 %v439, %v438
      %v455 = vpack.c.b16 %v441, %v440
      %v456 = vpack.c.b16 %v443, %v442
      %v457 = vpack.c.b16 %v445, %v444
      %v458 = vpack.c.b16 %v447, %v446
      %v459 = vpack.c.b16 %v449, %v448
      %v460 = vpack.c.b16 %v451, %v450
      %v461 = vpack.c.b16 %v453, %v452
      %470 = vmatprep.subr.bf16.mxu0 0
      %471 = vmatpush1.bf16.msra.mxu0 %v454
      %472 = vmatprep.subr.bf16.mxu0 0
      %473 = vmatpush1.bf16.msra.mxu0 %v455
      %474 = vmatprep.subr.bf16.mxu0 0
      %475 = vmatpush1.bf16.msra.mxu0 %v456
      %476 = vmatprep.subr.bf16.mxu0 0
      %477 = vmatpush1.bf16.msra.mxu0 %v457
      %478 = vmatprep.subr.bf16.mxu0 0
      %479 = vmatpush1.bf16.msra.mxu0 %v458
      %480 = vmatprep.subr.bf16.mxu0 0
      %481 = vmatpush1.bf16.msra.mxu0 %v459
      %482 = vmatprep.subr.bf16.mxu0 0
      %483 = vmatpush1.bf16.msra.mxu0 %v460
      %484 = vmatprep.subr.bf16.mxu0 0
      %485 = vmatpush1.bf16.msra.mxu0 %v461
      %486 = vmatprep.subr.bf16.mxu0 0
      %487 = vmatpush1.bf16.msra.mxu0 0
      %488 = vmatprep.subr.bf16.mxu0 0
      %489 = vmatpush1.bf16.msra.mxu0 0
      %490 = vmatprep.subr.bf16.mxu0 0
      %491 = vmatpush1.bf16.msra.mxu0 0
      %492 = vmatprep.subr.bf16.mxu0 0
      %493 = vmatpush1.bf16.msra.mxu0 0
      %494 = vmatprep.subr.bf16.mxu0 0
      %495 = vmatpush1.bf16.msra.mxu0 0
      %496 = vmatprep.subr.bf16.mxu0 0
      %497 = vmatpush1.bf16.msra.mxu0 0
      %498 = vmatprep.subr.bf16.mxu0 0
      %499 = vmatpush1.bf16.msra.mxu0 0
      %500 = vmatprep.subr.bf16.mxu0 0
      %501 = vmatpush1.bf16.msra.mxu0 0
      %502 = vmatprep.mubr.bf16.mxu0 0
      %503 = vmatmul.mubr.bf16.gmra.mrb[0].mxu0 %v401
      %v504 = vpop.f32.mrb[0].mxu0
      %v505 = vadd.f32 %v421, %v504
      %v506 = vpop.f32.mrb[0].mxu0
      %v507 = vpop.f32.mrb[0].mxu0
      %v508 = vadd.f32 %v421, %v507
      %v509 = vpop.f32.mrb[0].mxu0
      %510 = vdwg.mxu0
      %vm511 = vcmask 64512
      %512 = vst.msk [vmem:[%s226] sm:$0xff] %vm511, %v505
      %513 = vst.msk [vmem:[%s226 + $0x8] sm:$0xff] %vm511, %v508
      %s514 = smul.u32 2, %s16
      %p515 = scmp.lt.s32.totalorder %s514, 3
      %s516 = scalar_select %p515, %s514, 3
      %s517 = smul.addr %s516, 8
      %s518 = scalar_lea.vmem %s5, %s517
      // Predicated region
      $region41: #{actor_critic_forward.1} parent=39 // pred_check
        %p519 = pneg %p144
      $region42: #{actor_critic_forward.1} parent=39 // pred_check_branch
        %521 = sbr.rel (%p519) target = $region44
      $region43: #{actor_critic_forward.1} parent=39 // pred_region
        %s522 = smul.u32 2, %s16
      $region44: #{actor_critic_forward.1} parent=39 // pred_fallthru
        _
    $region40: #{actor_critic_forward.1} parent=5 // pred_fallthru
      _
    %p523 = scmp.le.s32.totalorder 2, %s11
    // Predicated region
    $region45: #{actor_critic_forward.1} parent=5 // pred_check
      %p524 = pneg %p523
    $region46: #{actor_critic_forward.1} parent=5 // pred_check_branch
      %526 = sbr.rel (%p524) target = $region48
    $region47: #{actor_critic_forward.1} parent=5 // pred_region
      %s527 = ssub.s32 %s11, 2
      // Predicated region
      $region49: #{actor_critic_forward.1} parent=47 // pred_check
        %p528 = pneg %p150
      $region50: #{actor_critic_forward.1} parent=47 // pred_check_branch
        %530 = sbr.rel (%p528) target = $region52
      $region51: #{actor_critic_forward.1} parent=47 // pred_region
        %s531 = smul.u32 2, %s17
        %p532 = scmp.lt.s32.totalorder %s531, 3
        %s533 = scalar_select %p532, %s531, 3
        %s534 = smul.addr %s533, 8
        %s535 = scalar_lea.vmem %s5, %s534
      $region52: #{actor_critic_forward.1} parent=47 // pred_fallthru
        _
    $region48: #{actor_critic_forward.1} parent=5 // pred_fallthru
      _
  $region6: #{actor_critic_forward.1} parent=0 // loop_footer
    %s15 = sadd.s32 1, %s11
  $region7: #{actor_critic_forward.1} parent=0 // loop_footer_branch
    %10 = sbr.rel target = $region3
  $region8: #{actor_critic_forward.1} parent=0 // loop_exit
    _

</llo_original>
